<compile_context>
chip_gen: v6e
topology: v6e:2x2x1
jax: 0.10.0
libtpu: 0.0.40
codegen_flags: <defaults>
</compile_context>

<pallas_src>
import functools

import jax
import jax.numpy as jnp
from jax.experimental import pallas as pl
from jax.experimental.pallas import tpu as pltpu

STATE_DIM = 3      # Pendulum-v1 observation_space.shape[0]
ACTION_DIM = 1     # Pendulum-v1 action_space.shape[0]
HIDDEN1 = 300
HIDDEN2 = 200

# Lane/sublane-aligned (padded) sizes used inside the kernel.
S_PAD = 8          # 3   -> 8    (full-array last dim; keeps input DMA tiny)
H1_PAD = 384       # 300 -> 384  (3 x 128)
H2_PAD = 256       # 200 -> 256  (2 x 128)
O_PAD = 128        # 1   -> 128  (1 x 128, lane-dense output store)

TB_MAX = 256       # batch tile: h1 [TB,384] + h2 [TB,256] f32 stay well under VMEM


def _round_up(x: int, m: int) -> int:
    return ((x + m - 1) // m) * m


def _pad_to(x, shape):
    pads = [(0, t - s) for s, t in zip(x.shape, shape)]
    return jnp.pad(x, pads)


def critic_v_kernel(s_ref, w1_ref, b1_ref, w2_ref, b2_ref, w3_ref, b3_ref, o_ref):
    # Fused 3-layer MLP on one [TB, S_PAD] batch tile; weights are VMEM-resident.
    x = s_ref[...]
    h1 = jnp.dot(x, w1_ref[...], preferred_element_type=jnp.float32) + b1_ref[...]
    h1 = jnp.maximum(h1, 0.0)
    h2 = jnp.dot(h1, w2_ref[...], preferred_element_type=jnp.float32) + b2_ref[...]
    h2 = jnp.maximum(h2, 0.0)
    out = jnp.dot(h2, w3_ref[...], preferred_element_type=jnp.float32) + b3_ref[...]
    o_ref[...] = out.astype(o_ref.dtype)


def prepare_params(w1, b1, w2, b2, w3, b3):
    """Zero-pad the (unpadded) [in, out] weights / [1, out] biases once."""
    return (
        _pad_to(w1.astype(jnp.float32), (S_PAD, H1_PAD)),
        _pad_to(b1.astype(jnp.float32), (1, H1_PAD)),
        _pad_to(w2.astype(jnp.float32), (H1_PAD, H2_PAD)),
        _pad_to(b2.astype(jnp.float32), (1, H2_PAD)),
        _pad_to(w3.astype(jnp.float32), (H2_PAD, O_PAD)),
        _pad_to(b3.astype(jnp.float32), (1, O_PAD)),
    )


@functools.partial(jax.jit, static_argnames=())
def critic_v_forward_padded(state, w1_p, b1_p, w2_p, b2_p, w3_p, b3_p):
    """state: [B, STATE_DIM] float32, pre-padded params -> [B, ACTION_DIM] float32."""
    B = state.shape[0]

    # Pick batch tile / padded batch so every block is (8,128)-friendly.
    b_sub = _round_up(B, 8)
    tb = min(TB_MAX, b_sub)
    b_pad = _round_up(b_sub, tb)

    s_p = _pad_to(state.astype(jnp.float32), (b_pad, S_PAD))

    grid = (b_pad // tb,)

    def resident(shape):
        # Whole (small) array as one block; same block every grid step -> stays in VMEM.
        return pl.BlockSpec(shape, lambda i: (0,) * len(shape))

    out_padded = pl.pallas_call(
        critic_v_kernel,
        out_shape=jax.ShapeDtypeStruct((b_pad, O_PAD), jnp.float32),
        grid_spec=pltpu.PrefetchScalarGridSpec(
            num_scalar_prefetch=0,
            grid=grid,
            in_specs=[
                pl.BlockSpec((tb, S_PAD), lambda i: (i, 0)),   # state tile
                resident((S_PAD, H1_PAD)), resident((1, H1_PAD)),
                resident((H1_PAD, H2_PAD)), resident((1, H2_PAD)),
                resident((H2_PAD, O_PAD)), resident((1, O_PAD)),
            ],
            out_specs=pl.BlockSpec((tb, O_PAD), lambda i: (i, 0)),
        ),
        compiler_params=pltpu.CompilerParams(
            dimension_semantics=("parallel",),
        ),
    )(s_p, w1_p, b1_p, w2_p, b2_p, w3_p, b3_p)

    # Slice the real rows / the real (single) output column back out.
    return out_padded[:B, :ACTION_DIM]


def critic_v_forward(state, w1, b1, w2, b2, w3, b3):
    """Convenience wrapper taking unpadded params (pads every call)."""
    return critic_v_forward_padded(state, *prepare_params(w1, b1, w2, b2, w3, b3))


def init_params(key):
    """Deterministic init mimicking PyTorch Linear default (U[-1/sqrt(fan_in), +1/sqrt(fan_in)])."""
    ks = jax.random.split(key, 6)

    def linear(kw, kb, fan_in, fan_out):
        bound = 1.0 / jnp.sqrt(jnp.float32(fan_in))
        w = jax.random.uniform(kw, (fan_in, fan_out), jnp.float32, -bound, bound)
        b = jax.random.uniform(kb, (1, fan_out), jnp.float32, -bound, bound)
        return w, b

    w1, b1 = linear(ks[0], ks[1], STATE_DIM, HIDDEN1)
    w2, b2 = linear(ks[2], ks[3], HIDDEN1, HIDDEN2)
    w3, b3 = linear(ks[4], ks[5], HIDDEN2, ACTION_DIM)
    return w1, b1, w2, b2, w3, b3


if __name__ == "__main__":
    key = jax.random.PRNGKey(0)
    k_param, k_state = jax.random.split(key)

    params = init_params(k_param)
    padded_params = prepare_params(*params)

    B = 5   # deliberately not a multiple of 8 to exercise row padding
    state = jax.random.normal(k_state, (B, STATE_DIM), dtype=jnp.float32)

    out = critic_v_forward_padded(state, *padded_params)
    out = jax.block_until_ready(out)

    # Pure-JAX reference for sanity check.
    w1, b1, w2, b2, w3, b3 = params
    ref = jnp.maximum(state @ w1 + b1, 0.0)
    ref = jnp.maximum(ref @ w2 + b2, 0.0)
    ref = ref @ w3 + b3

    assert out.shape == (B, ACTION_DIM)
    assert jnp.allclose(out, ref, atol=1e-5, rtol=1e-5)
    print("KERNEL_OK")
</pallas_src>

<mosaic_0001>
module attributes {stable_mosaic.version = 11 : i64} {
  func.func @critic_v_kernel(%arg0: i32, %arg1: memref<8x8xf32, #tpu.memory_space<vmem>>, %arg2: memref<8x384xf32, #tpu.memory_space<vmem>>, %arg3: memref<1x384xf32, #tpu.memory_space<vmem>>, %arg4: memref<384x256xf32, #tpu.memory_space<vmem>>, %arg5: memref<1x256xf32, #tpu.memory_space<vmem>>, %arg6: memref<256x128xf32, #tpu.memory_space<vmem>>, %arg7: memref<1x128xf32, #tpu.memory_space<vmem>>, %arg8: memref<8x128xf32, #tpu.memory_space<vmem>>) attributes {dimension_semantics = [#tpu.dimension_semantics<parallel>], iteration_bounds = array<i64: 1>, scalar_prefetch = 0 : i64, scratch_operands = 0 : i64, tpu.core_type = #tpu.core_type<tc>, window_params = [{transform_indices = @transform_0, window_bounds = array<i64: 8, 8>}, {pipeline_mode = #tpu.pipeline_mode<synchronous>, transform_indices = @transform_1, window_bounds = array<i64: 8, 384>}, {pipeline_mode = #tpu.pipeline_mode<synchronous>, transform_indices = @transform_2, window_bounds = array<i64: 1, 384>}, {pipeline_mode = #tpu.pipeline_mode<synchronous>, transform_indices = @transform_3, window_bounds = array<i64: 384, 256>}, {pipeline_mode = #tpu.pipeline_mode<synchronous>, transform_indices = @transform_4, window_bounds = array<i64: 1, 256>}, {pipeline_mode = #tpu.pipeline_mode<synchronous>, transform_indices = @transform_5, window_bounds = array<i64: 256, 128>}, {pipeline_mode = #tpu.pipeline_mode<synchronous>, transform_indices = @transform_6, window_bounds = array<i64: 1, 128>}, {transform_indices = @transform_7, window_bounds = array<i64: 8, 128>}]} {
    %c0 = arith.constant 0 : index
    %c0_0 = arith.constant 0 : index
    %0 = vector.load %arg1[%c0, %c0_0] : memref<8x8xf32, #tpu.memory_space<vmem>>, vector<8x8xf32>
    %c0_1 = arith.constant 0 : index
    %c0_2 = arith.constant 0 : index
    %1 = vector.load %arg2[%c0_1, %c0_2] : memref<8x384xf32, #tpu.memory_space<vmem>>, vector<8x384xf32>
    %cst = arith.constant dense<0.000000e+00> : vector<8x384xf32>
    %2 = tpu.matmul %0, %1, %cst {dimension_numbers = #tpu.dot_dimension_numbers<[1], [0], [0], [1], [0, 0, 1, 1], [], []>} : vector<8x8xf32>, vector<8x384xf32>, vector<8x384xf32> -> vector<8x384xf32>
    %c0_3 = arith.constant 0 : index
    %c0_4 = arith.constant 0 : index
    %3 = vector.load %arg3[%c0_3, %c0_4] : memref<1x384xf32, #tpu.memory_space<vmem>>, vector<1x384xf32>
    %4 = vector.broadcast %3 : vector<1x384xf32> to vector<8x384xf32>
    %5 = arith.addf %2, %4 : vector<8x384xf32>
    %cst_5 = arith.constant 0.000000e+00 : f32
    %6 = vector.broadcast %cst_5 : f32 to vector<8x384xf32>
    %7 = arith.maximumf %5, %6 : vector<8x384xf32>
    %c0_6 = arith.constant 0 : index
    %c0_7 = arith.constant 0 : index
    %8 = vector.load %arg4[%c0_6, %c0_7] : memref<384x256xf32, #tpu.memory_space<vmem>>, vector<384x256xf32>
    %cst_8 = arith.constant dense<0.000000e+00> : vector<8x256xf32>
    %9 = tpu.matmul %7, %8, %cst_8 {dimension_numbers = #tpu.dot_dimension_numbers<[1], [0], [0], [1], [0, 0, 1, 1], [], []>} : vector<8x384xf32>, vector<384x256xf32>, vector<8x256xf32> -> vector<8x256xf32>
    %c0_9 = arith.constant 0 : index
    %c0_10 = arith.constant 0 : index
    %10 = vector.load %arg5[%c0_9, %c0_10] : memref<1x256xf32, #tpu.memory_space<vmem>>, vector<1x256xf32>
    %11 = vector.broadcast %10 : vector<1x256xf32> to vector<8x256xf32>
    %12 = arith.addf %9, %11 : vector<8x256xf32>
    %cst_11 = arith.constant 0.000000e+00 : f32
    %13 = vector.broadcast %cst_11 : f32 to vector<8x256xf32>
    %14 = arith.maximumf %12, %13 : vector<8x256xf32>
    %c0_12 = arith.constant 0 : index
    %c0_13 = arith.constant 0 : index
    %15 = vector.load %arg6[%c0_12, %c0_13] : memref<256x128xf32, #tpu.memory_space<vmem>>, vector<256x128xf32>
    %cst_14 = arith.constant dense<0.000000e+00> : vector<8x128xf32>
    %16 = tpu.matmul %14, %15, %cst_14 {dimension_numbers = #tpu.dot_dimension_numbers<[1], [0], [0], [1], [0, 0, 1, 1], [], []>} : vector<8x256xf32>, vector<256x128xf32>, vector<8x128xf32> -> vector<8x128xf32>
    %c0_15 = arith.constant 0 : index
    %c0_16 = arith.constant 0 : index
    %17 = vector.load %arg7[%c0_15, %c0_16] : memref<1x128xf32, #tpu.memory_space<vmem>>, vector<1x128xf32>
    %18 = vector.broadcast %17 : vector<1x128xf32> to vector<8x128xf32>
    %19 = arith.addf %16, %18 : vector<8x128xf32>
    %c0_17 = arith.constant 0 : index
    %c0_18 = arith.constant 0 : index
    %20 = vector.load %arg8[%c0_17, %c0_18] : memref<8x128xf32, #tpu.memory_space<vmem>>, vector<8x128xf32>
    tpu.vector_store %arg8[%c0_17, %c0_18], %19 {strides = array<i32>} : memref<8x128xf32, #tpu.memory_space<vmem>>, vector<8x128xf32>,
    return
  }
  func.func @transform_0(%arg0: i32) -> (i32, i32) {
    %c0_i32 = arith.constant 0 : i32
    %c0_i32_0 = arith.constant 0 : i32
    return %arg0, %c0_i32 : i32, i32
  }
  func.func @transform_1(%arg0: i32) -> (i32, i32) {
    %c0_i32 = arith.constant 0 : i32
    %c0_i32_0 = arith.constant 0 : i32
    %c0_i32_1 = arith.constant 0 : i32
    return %c0_i32, %c0_i32_0 : i32, i32
  }
  func.func @transform_2(%arg0: i32) -> (i32, i32) {
    %c0_i32 = arith.constant 0 : i32
    %c0_i32_0 = arith.constant 0 : i32
    %c0_i32_1 = arith.constant 0 : i32
    return %c0_i32, %c0_i32_0 : i32, i32
  }
  func.func @transform_3(%arg0: i32) -> (i32, i32) {
    %c0_i32 = arith.constant 0 : i32
    %c0_i32_0 = arith.constant 0 : i32
    %c0_i32_1 = arith.constant 0 : i32
    return %c0_i32, %c0_i32_0 : i32, i32
  }
  func.func @transform_4(%arg0: i32) -> (i32, i32) {
    %c0_i32 = arith.constant 0 : i32
    %c0_i32_0 = arith.constant 0 : i32
    %c0_i32_1 = arith.constant 0 : i32
    return %c0_i32, %c0_i32_0 : i32, i32
  }
  func.func @transform_5(%arg0: i32) -> (i32, i32) {
    %c0_i32 = arith.constant 0 : i32
    %c0_i32_0 = arith.constant 0 : i32
    %c0_i32_1 = arith.constant 0 : i32
    return %c0_i32, %c0_i32_0 : i32, i32
  }
  func.func @transform_6(%arg0: i32) -> (i32, i32) {
    %c0_i32 = arith.constant 0 : i32
    %c0_i32_0 = arith.constant 0 : i32
    %c0_i32_1 = arith.constant 0 : i32
    return %c0_i32, %c0_i32_0 : i32, i32
  }
  func.func @transform_7(%arg0: i32) -> (i32, i32) {
    %c0_i32 = arith.constant 0 : i32
    %c0_i32_0 = arith.constant 0 : i32
    return %arg0, %c0_i32 : i32, i32
  }
}

</mosaic_0001>

<llo_original>
// kernel: critic_v_forward_padded.1
$region0: #{critic_v_forward_padded.1}
  #allocation0 [shape = 'u32[]', space=smem, size = 0x4, offset = 0x4, fixed_abs, tag = 'smem constant byte address 0x4 - core index']
  #allocation1 [shape = 'u32[144,128]{1,0:T(1,128)}', space=vmem, size = 0x12000, scoped, tag = 'internal scratch']
  %s0 = inlined_call_operand.vmem [shape: f32[8,8], index: 0, kind: input, shape index: {}]
  %s1 = inlined_call_operand.vmem [shape: f32[8,384], index: 1, kind: input, shape index: {}]
  %s2 = inlined_call_operand.vmem [shape: f32[1,384], index: 2, kind: input, shape index: {}]
  %s3 = inlined_call_operand.hbm [shape: f32[384,256], index: 3, kind: input, shape index: {}]
  %s4 = inlined_call_operand.vmem [shape: f32[1,256], index: 4, kind: input, shape index: {}]
  %s5 = inlined_call_operand.hbm [shape: f32[256,128], index: 5, kind: input, shape index: {}]
  %s6 = inlined_call_operand.vmem [shape: f32[1,128], index: 6, kind: input, shape index: {}]
  %s7 = inlined_call_operand.vmem [shape: f32[8,128], index: 7, kind: output, shape index: {}]
  %s8 = sld [smem:[#allocation0]]
  $region46: #{critic_v_forward_padded.1} parent=0
    _
  %s10 = ssub.s32 1, %s8
  %s11 = scalar_select 0, %s10, %s8
  $region1: #{critic_v_forward_padded.1} parent=0
    #allocation2 [shape = 'u8[393216]{0}', space=vmem, size = 0x60000, scoped, tag = 'input window, operand 3, single buffered']
    #allocation3 [shape = 's32[1]{0}', space=sflag, size = 0x4, scoped, tag = 'scoped memory for critic_v_forward_padded.1']
    #allocation4 [shape = 'u8[131072]{0}', space=vmem, size = 0x20000, scoped, tag = 'input window, operand 5, single buffered']
    #allocation5 [shape = 's32[1]{0}', space=sflag, size = 0x4, scoped, tag = 'scoped memory for critic_v_forward_padded.1']
    %12 = vsyncpa [#allocation3], 0
    %13 = vsyncpa [#allocation5], 0
    // Predicated region
    $region2: #{critic_v_forward_padded.1} parent=1 // pred_check
      _
    $region3: #{critic_v_forward_padded.1} parent=1 // pred_check_branch
      %15 = sbr.rel (0) target = $region5
    $region4: #{critic_v_forward_padded.1} parent=1 // pred_region
      _
    $region5: #{critic_v_forward_padded.1} parent=1 // pred_fallthru
      _
    // Predicated region
    $region6: #{critic_v_forward_padded.1} parent=1 // pred_check
      _
    $region7: #{critic_v_forward_padded.1} parent=1 // pred_check_branch
      %17 = sbr.rel (0) target = $region9
    $region8: #{critic_v_forward_padded.1} parent=1 // pred_region
      _
    $region9: #{critic_v_forward_padded.1} parent=1 // pred_fallthru
      _
    // Predicated region
    $region10: #{critic_v_forward_padded.1} parent=1 // pred_check
      _
    $region11: #{critic_v_forward_padded.1} parent=1 // pred_check_branch
      %19 = sbr.rel (0) target = $region13
    $region12: #{critic_v_forward_padded.1} parent=1 // pred_region
      _
    $region13: #{critic_v_forward_padded.1} parent=1 // pred_fallthru
      _
    // Predicated region
    $region14: #{critic_v_forward_padded.1} parent=1 // pred_check
      _
    $region15: #{critic_v_forward_padded.1} parent=1 // pred_check_branch
      %21 = sbr.rel (0) target = $region17
    $region16: #{critic_v_forward_padded.1} parent=1 // pred_region
      %s23 = ssub.s32 12288, 12288
      %24 = vsyncadd [#allocation3], %s23
      %s25 = sshll.u32 [#allocation2], 4
      %s26 = int_to_ptr.vmem [resolvable:$true] %s25
      %31 = dma.hbm_to_vmem [thread:$0]  %s3, 12288, %s26, [#allocation3], 256, 256, 16
    $region17: #{critic_v_forward_padded.1} parent=1 // pred_fallthru
      _
    // Predicated region
    $region18: #{critic_v_forward_padded.1} parent=1 // pred_check
      _
    $region19: #{critic_v_forward_padded.1} parent=1 // pred_check_branch
      %33 = sbr.rel (0) target = $region21
    $region20: #{critic_v_forward_padded.1} parent=1 // pred_region
      _
    $region21: #{critic_v_forward_padded.1} parent=1 // pred_fallthru
      _
    // Predicated region
    $region22: #{critic_v_forward_padded.1} parent=1 // pred_check
      _
    $region23: #{critic_v_forward_padded.1} parent=1 // pred_check_branch
      %35 = sbr.rel (0) target = $region25
    $region24: #{critic_v_forward_padded.1} parent=1 // pred_region
      %s37 = ssub.s32 4096, 4096
      %38 = vsyncadd [#allocation5], %s37
      %s39 = sshll.u32 [#allocation4], 4
      %s40 = int_to_ptr.vmem [resolvable:$true] %s39
      %45 = dma.hbm_to_vmem [thread:$0]  %s5, 4096, %s40, [#allocation5], 128, 128, 8
    $region25: #{critic_v_forward_padded.1} parent=1 // pred_fallthru
      _
    // Predicated region
    $region26: #{critic_v_forward_padded.1} parent=1 // pred_check
      _
    $region27: #{critic_v_forward_padded.1} parent=1 // pred_check_branch
      %47 = sbr.rel (0) target = $region29
    $region28: #{critic_v_forward_padded.1} parent=1 // pred_region
      _
    $region29: #{critic_v_forward_padded.1} parent=1 // pred_fallthru
      _
    // Predicated region
    $region30: #{critic_v_forward_padded.1} parent=1 // pred_check
      _
    $region31: #{critic_v_forward_padded.1} parent=1 // pred_check_branch
      %49 = sbr.rel (0) target = $region33
    $region32: #{critic_v_forward_padded.1} parent=1 // pred_region
      %50 = dma.done [#allocation3], 12288
    $region33: #{critic_v_forward_padded.1} parent=1 // pred_fallthru
      _
    // Predicated region
    $region34: #{critic_v_forward_padded.1} parent=1 // pred_check
      _
    $region35: #{critic_v_forward_padded.1} parent=1 // pred_check_branch
      %52 = sbr.rel (0) target = $region37
    $region36: #{critic_v_forward_padded.1} parent=1 // pred_region
      %53 = dma.done [#allocation5], 4096
    $region37: #{critic_v_forward_padded.1} parent=1 // pred_fallthru
      _
    %v54 = vld [vmem:[%s0] sm:$0xff]
    %v55 = vld [vmem:[%s1] sm:$0xff]
    %v56 = vld [vmem:[%s1 + $0x8] sm:$0xff]
    %v57 = vld [vmem:[%s1 + $0x10] sm:$0xff]
    %v58 = vld [vmem:[%s2] sm:$0x7]
    %v60 = vlaneseq
    %v61 = vshrl.u32 %v60, 7
    %v62 = vsub.s32 0, %v61
    %v63 = vrot.slane %v58, %v62
    %v64 = vlaneseq
    %v65 = vshrl.u32 %v64, 7
    %v66 = vsub.s32 1, %v65
    %v67 = vrot.slane %v58, %v66
    %v68 = vlaneseq
    %v69 = vshrl.u32 %v68, 7
    %v70 = vsub.s32 2, %v69
    %v71 = vrot.slane %v58, %v70
    %vm75 = vcmask 64512
    %v77 = vsel %vm75, %v54, 0
    %79 = vmatprep.subr.mxu0 0.0
    %80 = vmatpush1.msra.mxu0 0.0
    %81 = vmatprep.subr.mxu0 0.0
    %82 = vmatpush1.msra.mxu0 0.0
    %83 = vmatprep.subr.mxu0 0.0
    %84 = vmatpush1.msra.mxu0 0.0
    %85 = vmatprep.subr.mxu0 0.0
    %86 = vmatpush1.msra.mxu0 0.0
    %87 = vmatprep.subr.mxu0 0.0
    %88 = vmatpush1.msra.mxu0 0.0
    %89 = vmatprep.subr.mxu0 0.0
    %90 = vmatpush1.msra.mxu0 0.0
    %91 = vmatprep.subr.mxu0 0.0
    %92 = vmatpush1.msra.mxu0 0.0
    %93 = vmatprep.subr.mxu0 0.0
    %94 = vmatpush1.msra.mxu0 0.0
    %95 = vmatprep.subr.mxu0 0.0
    %96 = vmatpush1.msra.mxu0 0.0
    %97 = vmatprep.subr.mxu0 0.0
    %98 = vmatpush1.msra.mxu0 0.0
    %99 = vmatprep.subr.mxu0 0.0
    %100 = vmatpush1.msra.mxu0 0.0
    %101 = vmatprep.subr.mxu0 0.0
    %102 = vmatpush1.msra.mxu0 0.0
    %103 = vmatprep.subr.mxu0 0.0
    %104 = vmatpush1.msra.mxu0 0.0
    %105 = vmatprep.subr.mxu0 0.0
    %106 = vmatpush1.msra.mxu0 0.0
    %107 = vmatprep.subr.mxu0 0.0
    %108 = vmatpush1.msra.mxu0 0.0
    %109 = vmatprep.subr.mxu0 %v56
    %110 = vmatpush1.msra.mxu0 %v55
    %111 = vmatprep.subr.mxu0 0.0
    %112 = vmatpush2.msra.mxu0 0.0
    %113 = vmatprep.subr.mxu0 0.0
    %114 = vmatpush2.msra.mxu0 0.0
    %115 = vmatprep.subr.mxu0 0.0
    %116 = vmatpush2.msra.mxu0 0.0
    %117 = vmatprep.subr.mxu0 0.0
    %118 = vmatpush2.msra.mxu0 0.0
    %119 = vmatprep.subr.mxu0 0.0
    %120 = vmatpush2.msra.mxu0 0.0
    %121 = vmatprep.subr.mxu0 0.0
    %122 = vmatpush2.msra.mxu0 0.0
    %123 = vmatprep.subr.mxu0 0.0
    %124 = vmatpush2.msra.mxu0 0.0
    %125 = vmatprep.subr.mxu0 0.0
    %126 = vmatpush2.msra.mxu0 0.0
    %127 = vmatprep.subr.mxu0 0.0
    %128 = vmatpush2.msra.mxu0 0.0
    %129 = vmatprep.subr.mxu0 0.0
    %130 = vmatpush2.msra.mxu0 0.0
    %131 = vmatprep.subr.mxu0 0.0
    %132 = vmatpush2.msra.mxu0 0.0
    %133 = vmatprep.subr.mxu0 0.0
    %134 = vmatpush2.msra.mxu0 0.0
    %135 = vmatprep.subr.mxu0 0.0
    %136 = vmatpush2.msra.mxu0 0.0
    %137 = vmatprep.subr.mxu0 0.0
    %138 = vmatpush2.msra.mxu0 0.0
    %139 = vmatprep.subr.mxu0 0.0
    %140 = vmatpush2.msra.mxu0 0.0
    %141 = vmatprep.subr.mxu0 0.0
    %142 = vmatpush2.msra.mxu0 0.0
    %143 = vmatprep.mubr.f32.mxu0 0.0
    %144 = vmatmul.mubr.f32.gmra.mxu0 %v77
    %v145 = vpop.f32.mrf.mxu0
    %v146 = vadd.f32 %v63, %v145
    %v147 = vpop.f32.mrf.mxu0
    %v148 = vadd.f32 %v67, %v147
    %149 = vdwg.mxu0
    %150 = vmatprep.subr.mxu0 0.0
    %151 = vmatpush1.msra.mxu0 0.0
    %152 = vmatprep.subr.mxu0 0.0
    %153 = vmatpush1.msra.mxu0 0.0
    %154 = vmatprep.subr.mxu0 0.0
    %155 = vmatpush1.msra.mxu0 0.0
    %156 = vmatprep.subr.mxu0 0.0
    %157 = vmatpush1.msra.mxu0 0.0
    %158 = vmatprep.subr.mxu0 0.0
    %159 = vmatpush1.msra.mxu0 0.0
    %160 = vmatprep.subr.mxu0 0.0
    %161 = vmatpush1.msra.mxu0 0.0
    %162 = vmatprep.subr.mxu0 0.0
    %163 = vmatpush1.msra.mxu0 0.0
    %164 = vmatprep.subr.mxu0 0.0
    %165 = vmatpush1.msra.mxu0 0.0
    %166 = vmatprep.subr.mxu0 0.0
    %167 = vmatpush1.msra.mxu0 0.0
    %168 = vmatprep.subr.mxu0 0.0
    %169 = vmatpush1.msra.mxu0 0.0
    %170 = vmatprep.subr.mxu0 0.0
    %171 = vmatpush1.msra.mxu0 0.0
    %172 = vmatprep.subr.mxu0 0.0
    %173 = vmatpush1.msra.mxu0 0.0
    %174 = vmatprep.subr.mxu0 0.0
    %175 = vmatpush1.msra.mxu0 0.0
    %176 = vmatprep.subr.mxu0 0.0
    %177 = vmatpush1.msra.mxu0 0.0
    %178 = vmatprep.subr.mxu0 0.0
    %179 = vmatpush1.msra.mxu0 0.0
    %180 = vmatprep.subr.mxu0 0.0
    %181 = vmatpush1.msra.mxu0 %v57
    %182 = vmatprep.subr.mxu0 0.0
    %183 = vmatpush2.msra.mxu0 0.0
    %184 = vmatprep.subr.mxu0 0.0
    %185 = vmatpush2.msra.mxu0 0.0
    %186 = vmatprep.subr.mxu0 0.0
    %187 = vmatpush2.msra.mxu0 0.0
    %188 = vmatprep.subr.mxu0 0.0
    %189 = vmatpush2.msra.mxu0 0.0
    %190 = vmatprep.subr.mxu0 0.0
    %191 = vmatpush2.msra.mxu0 0.0
    %192 = vmatprep.subr.mxu0 0.0
    %193 = vmatpush2.msra.mxu0 0.0
    %194 = vmatprep.subr.mxu0 0.0
    %195 = vmatpush2.msra.mxu0 0.0
    %196 = vmatprep.subr.mxu0 0.0
    %197 = vmatpush2.msra.mxu0 0.0
    %198 = vmatprep.subr.mxu0 0.0
    %199 = vmatpush2.msra.mxu0 0.0
    %200 = vmatprep.subr.mxu0 0.0
    %201 = vmatpush2.msra.mxu0 0.0
    %202 = vmatprep.subr.mxu0 0.0
    %203 = vmatpush2.msra.mxu0 0.0
    %204 = vmatprep.subr.mxu0 0.0
    %205 = vmatpush2.msra.mxu0 0.0
    %206 = vmatprep.subr.mxu0 0.0
    %207 = vmatpush2.msra.mxu0 0.0
    %208 = vmatprep.subr.mxu0 0.0
    %209 = vmatpush2.msra.mxu0 0.0
    %210 = vmatprep.subr.mxu0 0.0
    %211 = vmatpush2.msra.mxu0 0.0
    %212 = vmatprep.subr.mxu0 0.0
    %213 = vmatpush2.msra.mxu0 0.0
    %214 = vmatprep.mubr.f32.mxu0 0.0
    %215 = vmatmul.mubr.f32.gmra.mxu0 %v77
    %v216 = vpop.f32.mrf.mxu0
    %v217 = vadd.f32 %v71, %v216
    %v218 = vpop.f32.mrf.mxu0
    %219 = vdwg.mxu0
    %v220 = vmax.f32 %v146, 0.0
    %v221 = vmax.f32 %v148, 0.0
    %v222 = vmax.f32 %v217, 0.0
    %v223 = vld [vmem:[#allocation2] sm:$0xff]
    %v224 = vld [vmem:[#allocation2 + $0x8] sm:$0xff]
    %v225 = vld [vmem:[#allocation2 + $0x10] sm:$0xff]
    %v226 = vld [vmem:[#allocation2 + $0x18] sm:$0xff]
    %v227 = vld [vmem:[#allocation2 + $0x20] sm:$0xff]
    %v228 = vld [vmem:[#allocation2 + $0x28] sm:$0xff]
    %v229 = vld [vmem:[#allocation2 + $0x30] sm:$0xff]
    %v230 = vld [vmem:[#allocation2 + $0x38] sm:$0xff]
    %v231 = vld [vmem:[#allocation2 + $0x40] sm:$0xff]
    %v232 = vld [vmem:[#allocation2 + $0x48] sm:$0xff]
    %v233 = vld [vmem:[#allocation2 + $0x50] sm:$0xff]
    %v234 = vld [vmem:[#allocation2 + $0x58] sm:$0xff]
    %v235 = vld [vmem:[#allocation2 + $0x60] sm:$0xff]
    %v236 = vld [vmem:[#allocation2 + $0x68] sm:$0xff]
    %v237 = vld [vmem:[#allocation2 + $0x70] sm:$0xff]
    %v238 = vld [vmem:[#allocation2 + $0x78] sm:$0xff]
    %v239 = vld [vmem:[#allocation2 + $0x80] sm:$0xff]
    %v240 = vld [vmem:[#allocation2 + $0x88] sm:$0xff]
    %v241 = vld [vmem:[#allocation2 + $0x90] sm:$0xff]
    %v242 = vld [vmem:[#allocation2 + $0x98] sm:$0xff]
    %v243 = vld [vmem:[#allocation2 + $0xa0] sm:$0xff]
    %v244 = vld [vmem:[#allocation2 + $0xa8] sm:$0xff]
    %v245 = vld [vmem:[#allocation2 + $0xb0] sm:$0xff]
    %v246 = vld [vmem:[#allocation2 + $0xb8] sm:$0xff]
    %v247 = vld [vmem:[#allocation2 + $0xc0] sm:$0xff]
    %v248 = vld [vmem:[#allocation2 + $0xc8] sm:$0xff]
    %v249 = vld [vmem:[#allocation2 + $0xd0] sm:$0xff]
    %v250 = vld [vmem:[#allocation2 + $0xd8] sm:$0xff]
    %v251 = vld [vmem:[#allocation2 + $0xe0] sm:$0xff]
    %v252 = vld [vmem:[#allocation2 + $0xe8] sm:$0xff]
    %v253 = vld [vmem:[#allocation2 + $0xf0] sm:$0xff]
    %v254 = vld [vmem:[#allocation2 + $0xf8] sm:$0xff]
    %v255 = vld [vmem:[#allocation2 + $0x100] sm:$0xff]
    %v256 = vld [vmem:[#allocation2 + $0x108] sm:$0xff]
    %v257 = vld [vmem:[#allocation2 + $0x110] sm:$0xff]
    %v258 = vld [vmem:[#allocation2 + $0x118] sm:$0xff]
    %v259 = vld [vmem:[#allocation2 + $0x120] sm:$0xff]
    %v260 = vld [vmem:[#allocation2 + $0x128] sm:$0xff]
    %v261 = vld [vmem:[#allocation2 + $0x130] sm:$0xff]
    %v262 = vld [vmem:[#allocation2 + $0x138] sm:$0xff]
    %v263 = vld [vmem:[#allocation2 + $0x140] sm:$0xff]
    %v264 = vld [vmem:[#allocation2 + $0x148] sm:$0xff]
    %v265 = vld [vmem:[#allocation2 + $0x150] sm:$0xff]
    %v266 = vld [vmem:[#allocation2 + $0x158] sm:$0xff]
    %v267 = vld [vmem:[#allocation2 + $0x160] sm:$0xff]
    %v268 = vld [vmem:[#allocation2 + $0x168] sm:$0xff]
    %v269 = vld [vmem:[#allocation2 + $0x170] sm:$0xff]
    %v270 = vld [vmem:[#allocation2 + $0x178] sm:$0xff]
    %v271 = vld [vmem:[#allocation2 + $0x180] sm:$0xff]
    %v272 = vld [vmem:[#allocation2 + $0x188] sm:$0xff]
    %v273 = vld [vmem:[#allocation2 + $0x190] sm:$0xff]
    %v274 = vld [vmem:[#allocation2 + $0x198] sm:$0xff]
    %v275 = vld [vmem:[#allocation2 + $0x1a0] sm:$0xff]
    %v276 = vld [vmem:[#allocation2 + $0x1a8] sm:$0xff]
    %v277 = vld [vmem:[#allocation2 + $0x1b0] sm:$0xff]
    %v278 = vld [vmem:[#allocation2 + $0x1b8] sm:$0xff]
    %v279 = vld [vmem:[#allocation2 + $0x1c0] sm:$0xff]
    %v280 = vld [vmem:[#allocation2 + $0x1c8] sm:$0xff]
    %v281 = vld [vmem:[#allocation2 + $0x1d0] sm:$0xff]
    %v282 = vld [vmem:[#allocation2 + $0x1d8] sm:$0xff]
    %v283 = vld [vmem:[#allocation2 + $0x1e0] sm:$0xff]
    %v284 = vld [vmem:[#allocation2 + $0x1e8] sm:$0xff]
    %v285 = vld [vmem:[#allocation2 + $0x1f0] sm:$0xff]
    %v286 = vld [vmem:[#allocation2 + $0x1f8] sm:$0xff]
    %v287 = vld [vmem:[#allocation2 + $0x200] sm:$0xff]
    %v288 = vld [vmem:[#allocation2 + $0x208] sm:$0xff]
    %v289 = vld [vmem:[#allocation2 + $0x210] sm:$0xff]
    %v290 = vld [vmem:[#allocation2 + $0x218] sm:$0xff]
    %v291 = vld [vmem:[#allocation2 + $0x220] sm:$0xff]
    %v292 = vld [vmem:[#allocation2 + $0x228] sm:$0xff]
    %v293 = vld [vmem:[#allocation2 + $0x230] sm:$0xff]
    %v294 = vld [vmem:[#allocation2 + $0x238] sm:$0xff]
    %v295 = vld [vmem:[#allocation2 + $0x240] sm:$0xff]
    %v296 = vld [vmem:[#allocation2 + $0x248] sm:$0xff]
    %v297 = vld [vmem:[#allocation2 + $0x250] sm:$0xff]
    %v298 = vld [vmem:[#allocation2 + $0x258] sm:$0xff]
    %v299 = vld [vmem:[#allocation2 + $0x260] sm:$0xff]
    %v300 = vld [vmem:[#allocation2 + $0x268] sm:$0xff]
    %v301 = vld [vmem:[#allocation2 + $0x270] sm:$0xff]
    %v302 = vld [vmem:[#allocation2 + $0x278] sm:$0xff]
    %v303 = vld [vmem:[#allocation2 + $0x280] sm:$0xff]
    %v304 = vld [vmem:[#allocation2 + $0x288] sm:$0xff]
    %v305 = vld [vmem:[#allocation2 + $0x290] sm:$0xff]
    %v306 = vld [vmem:[#allocation2 + $0x298] sm:$0xff]
    %v307 = vld [vmem:[#allocation2 + $0x2a0] sm:$0xff]
    %v308 = vld [vmem:[#allocation2 + $0x2a8] sm:$0xff]
    %v309 = vld [vmem:[#allocation2 + $0x2b0] sm:$0xff]
    %v310 = vld [vmem:[#allocation2 + $0x2b8] sm:$0xff]
    %v311 = vld [vmem:[#allocation2 + $0x2c0] sm:$0xff]
    %v312 = vld [vmem:[#allocation2 + $0x2c8] sm:$0xff]
    %v313 = vld [vmem:[#allocation2 + $0x2d0] sm:$0xff]
    %v314 = vld [vmem:[#allocation2 + $0x2d8] sm:$0xff]
    %v315 = vld [vmem:[#allocation2 + $0x2e0] sm:$0xff]
    %v316 = vld [vmem:[#allocation2 + $0x2e8] sm:$0xff]
    %v317 = vld [vmem:[#allocation2 + $0x2f0] sm:$0xff]
    %v318 = vld [vmem:[#allocation2 + $0x2f8] sm:$0xff]
    %v319 = vld [vmem:[%s4] sm:$0x3]
    %v321 = vlaneseq
    %v322 = vshrl.u32 %v321, 7
    %v323 = vsub.s32 0, %v322
    %v324 = vrot.slane %v319, %v323
    %v325 = vlaneseq
    %v326 = vshrl.u32 %v325, 7
    %v327 = vsub.s32 1, %v326
    %v328 = vrot.slane %v319, %v327
    %331 = vmatprep.subr.mxu0 %v254
    %332 = vmatpush1.msra.mxu0 %v253
    %333 = vmatprep.subr.mxu0 %v252
    %334 = vmatpush1.msra.mxu0 %v251
    %335 = vmatprep.subr.mxu0 %v250
    %336 = vmatpush1.msra.mxu0 %v249
    %337 = vmatprep.subr.mxu0 %v248
    %338 = vmatpush1.msra.mxu0 %v247
    %339 = vmatprep.subr.mxu0 %v246
    %340 = vmatpush1.msra.mxu0 %v245
    %341 = vmatprep.subr.mxu0 %v244
    %342 = vmatpush1.msra.mxu0 %v243
    %343 = vmatprep.subr.mxu0 %v242
    %344 = vmatpush1.msra.mxu0 %v241
    %345 = vmatprep.subr.mxu0 %v240
    %346 = vmatpush1.msra.mxu0 %v239
    %347 = vmatprep.subr.mxu0 %v238
    %348 = vmatpush1.msra.mxu0 %v237
    %349 = vmatprep.subr.mxu0 %v236
    %350 = vmatpush1.msra.mxu0 %v235
    %351 = vmatprep.subr.mxu0 %v234
    %352 = vmatpush1.msra.mxu0 %v233
    %353 = vmatprep.subr.mxu0 %v232
    %354 = vmatpush1.msra.mxu0 %v231
    %355 = vmatprep.subr.mxu0 %v230
    %356 = vmatpush1.msra.mxu0 %v229
    %357 = vmatprep.subr.mxu0 %v228
    %358 = vmatpush1.msra.mxu0 %v227
    %359 = vmatprep.subr.mxu0 %v226
    %360 = vmatpush1.msra.mxu0 %v225
    %361 = vmatprep.subr.mxu0 %v224
    %362 = vmatpush1.msra.mxu0 %v223
    %363 = vmatprep.subr.mxu0 %v286
    %364 = vmatpush2.msra.mxu0 %v285
    %365 = vmatprep.subr.mxu0 %v284
    %366 = vmatpush2.msra.mxu0 %v283
    %367 = vmatprep.subr.mxu0 %v282
    %368 = vmatpush2.msra.mxu0 %v281
    %369 = vmatprep.subr.mxu0 %v280
    %370 = vmatpush2.msra.mxu0 %v279
    %371 = vmatprep.subr.mxu0 %v278
    %372 = vmatpush2.msra.mxu0 %v277
    %373 = vmatprep.subr.mxu0 %v276
    %374 = vmatpush2.msra.mxu0 %v275
    %375 = vmatprep.subr.mxu0 %v274
    %376 = vmatpush2.msra.mxu0 %v273
    %377 = vmatprep.subr.mxu0 %v272
    %378 = vmatpush2.msra.mxu0 %v271
    %379 = vmatprep.subr.mxu0 %v270
    %380 = vmatpush2.msra.mxu0 %v269
    %381 = vmatprep.subr.mxu0 %v268
    %382 = vmatpush2.msra.mxu0 %v267
    %383 = vmatprep.subr.mxu0 %v266
    %384 = vmatpush2.msra.mxu0 %v265
    %385 = vmatprep.subr.mxu0 %v264
    %386 = vmatpush2.msra.mxu0 %v263
    %387 = vmatprep.subr.mxu0 %v262
    %388 = vmatpush2.msra.mxu0 %v261
    %389 = vmatprep.subr.mxu0 %v260
    %390 = vmatpush2.msra.mxu0 %v259
    %391 = vmatprep.subr.mxu0 %v258
    %392 = vmatpush2.msra.mxu0 %v257
    %393 = vmatprep.subr.mxu0 %v256
    %394 = vmatpush2.msra.mxu0 %v255
    %395 = vmatprep.mubr.f32.mxu0 %v221
    %396 = vmatmul.mubr.f32.gmra.mxu0 %v220
    %v397 = vpop.f32.mrf.mxu0
    %v398 = vadd.f32 %v324, %v397
    %v399 = vpop.f32.mrf.mxu0
    %v400 = vadd.f32 %v328, %v399
    %401 = vdwg.mxu0
    %402 = vmatprep.subr.mxu0 %v318
    %403 = vmatpush1.msra.mxu0 %v317
    %404 = vmatprep.subr.mxu0 %v316
    %405 = vmatpush1.msra.mxu0 %v315
    %406 = vmatprep.subr.mxu0 %v314
    %407 = vmatpush1.msra.mxu0 %v313
    %408 = vmatprep.subr.mxu0 %v312
    %409 = vmatpush1.msra.mxu0 %v311
    %410 = vmatprep.subr.mxu0 %v310
    %411 = vmatpush1.msra.mxu0 %v309
    %412 = vmatprep.subr.mxu0 %v308
    %413 = vmatpush1.msra.mxu0 %v307
    %414 = vmatprep.subr.mxu0 %v306
    %415 = vmatpush1.msra.mxu0 %v305
    %416 = vmatprep.subr.mxu0 %v304
    %417 = vmatpush1.msra.mxu0 %v303
    %418 = vmatprep.subr.mxu0 %v302
    %419 = vmatpush1.msra.mxu0 %v301
    %420 = vmatprep.subr.mxu0 %v300
    %421 = vmatpush1.msra.mxu0 %v299
    %422 = vmatprep.subr.mxu0 %v298
    %423 = vmatpush1.msra.mxu0 %v297
    %424 = vmatprep.subr.mxu0 %v296
    %425 = vmatpush1.msra.mxu0 %v295
    %426 = vmatprep.subr.mxu0 %v294
    %427 = vmatpush1.msra.mxu0 %v293
    %428 = vmatprep.subr.mxu0 %v292
    %429 = vmatpush1.msra.mxu0 %v291
    %430 = vmatprep.subr.mxu0 %v290
    %431 = vmatpush1.msra.mxu0 %v289
    %432 = vmatprep.subr.mxu0 %v288
    %433 = vmatpush1.msra.mxu0 %v287
    %434 = vmatprep.subr.mxu0 0.0
    %435 = vmatpush2.msra.mxu0 0.0
    %436 = vmatprep.subr.mxu0 0.0
    %437 = vmatpush2.msra.mxu0 0.0
    %438 = vmatprep.subr.mxu0 0.0
    %439 = vmatpush2.msra.mxu0 0.0
    %440 = vmatprep.subr.mxu0 0.0
    %441 = vmatpush2.msra.mxu0 0.0
    %442 = vmatprep.subr.mxu0 0.0
    %443 = vmatpush2.msra.mxu0 0.0
    %444 = vmatprep.subr.mxu0 0.0
    %445 = vmatpush2.msra.mxu0 0.0
    %446 = vmatprep.subr.mxu0 0.0
    %447 = vmatpush2.msra.mxu0 0.0
    %448 = vmatprep.subr.mxu0 0.0
    %449 = vmatpush2.msra.mxu0 0.0
    %450 = vmatprep.subr.mxu0 0.0
    %451 = vmatpush2.msra.mxu0 0.0
    %452 = vmatprep.subr.mxu0 0.0
    %453 = vmatpush2.msra.mxu0 0.0
    %454 = vmatprep.subr.mxu0 0.0
    %455 = vmatpush2.msra.mxu0 0.0
    %456 = vmatprep.subr.mxu0 0.0
    %457 = vmatpush2.msra.mxu0 0.0
    %458 = vmatprep.subr.mxu0 0.0
    %459 = vmatpush2.msra.mxu0 0.0
    %460 = vmatprep.subr.mxu0 0.0
    %461 = vmatpush2.msra.mxu0 0.0
    %462 = vmatprep.subr.mxu0 0.0
    %463 = vmatpush2.msra.mxu0 0.0
    %464 = vmatprep.subr.mxu0 0.0
    %465 = vmatpush2.msra.mxu0 0.0
    %466 = vmatprep.mubr.f32.mxu0 0.0
    %467 = vmatmul.mubr.f32.gmra.mxu0 %v222
    %v468 = vpop.f32.mrf.mxu0
    %v469 = vadd.f32 %v398, %v468
    %v470 = vpop.f32.mrf.mxu0
    %v471 = vadd.f32 %v400, %v470
    %472 = vdwg.mxu0
    %v473 = vmax.f32 %v469, 0.0
    %v474 = vmax.f32 %v471, 0.0
    %v475 = vld [vmem:[#allocation4] sm:$0xff]
    %v476 = vld [vmem:[#allocation4 + $0x8] sm:$0xff]
    %v477 = vld [vmem:[#allocation4 + $0x10] sm:$0xff]
    %v478 = vld [vmem:[#allocation4 + $0x18] sm:$0xff]
    %v479 = vld [vmem:[#allocation4 + $0x20] sm:$0xff]
    %v480 = vld [vmem:[#allocation4 + $0x28] sm:$0xff]
    %v481 = vld [vmem:[#allocation4 + $0x30] sm:$0xff]
    %v482 = vld [vmem:[#allocation4 + $0x38] sm:$0xff]
    %v483 = vld [vmem:[#allocation4 + $0x40] sm:$0xff]
    %v484 = vld [vmem:[#allocation4 + $0x48] sm:$0xff]
    %v485 = vld [vmem:[#allocation4 + $0x50] sm:$0xff]
    %v486 = vld [vmem:[#allocation4 + $0x58] sm:$0xff]
    %v487 = vld [vmem:[#allocation4 + $0x60] sm:$0xff]
    %v488 = vld [vmem:[#allocation4 + $0x68] sm:$0xff]
    %v489 = vld [vmem:[#allocation4 + $0x70] sm:$0xff]
    %v490 = vld [vmem:[#allocation4 + $0x78] sm:$0xff]
    %v491 = vld [vmem:[#allocation4 + $0x80] sm:$0xff]
    %v492 = vld [vmem:[#allocation4 + $0x88] sm:$0xff]
    %v493 = vld [vmem:[#allocation4 + $0x90] sm:$0xff]
    %v494 = vld [vmem:[#allocation4 + $0x98] sm:$0xff]
    %v495 = vld [vmem:[#allocation4 + $0xa0] sm:$0xff]
    %v496 = vld [vmem:[#allocation4 + $0xa8] sm:$0xff]
    %v497 = vld [vmem:[#allocation4 + $0xb0] sm:$0xff]
    %v498 = vld [vmem:[#allocation4 + $0xb8] sm:$0xff]
    %v499 = vld [vmem:[#allocation4 + $0xc0] sm:$0xff]
    %v500 = vld [vmem:[#allocation4 + $0xc8] sm:$0xff]
    %v501 = vld [vmem:[#allocation4 + $0xd0] sm:$0xff]
    %v502 = vld [vmem:[#allocation4 + $0xd8] sm:$0xff]
    %v503 = vld [vmem:[#allocation4 + $0xe0] sm:$0xff]
    %v504 = vld [vmem:[#allocation4 + $0xe8] sm:$0xff]
    %v505 = vld [vmem:[#allocation4 + $0xf0] sm:$0xff]
    %v506 = vld [vmem:[#allocation4 + $0xf8] sm:$0xff]
    %v507 = vld [vmem:[%s6] sm:$0x1]
    %v509 = vlaneseq
    %v510 = vshrl.u32 %v509, 7
    %v511 = vsub.s32 0, %v510
    %v512 = vrot.slane %v507, %v511
    %514 = vmatprep.subr.mxu0 0.0
    %515 = vmatpush1.msra.mxu0 %v490
    %516 = vmatprep.subr.mxu0 0.0
    %517 = vmatpush1.msra.mxu0 %v489
    %518 = vmatprep.subr.mxu0 0.0
    %519 = vmatpush1.msra.mxu0 %v488
    %520 = vmatprep.subr.mxu0 0.0
    %521 = vmatpush1.msra.mxu0 %v487
    %522 = vmatprep.subr.mxu0 0.0
    %523 = vmatpush1.msra.mxu0 %v486
    %524 = vmatprep.subr.mxu0 0.0
    %525 = vmatpush1.msra.mxu0 %v485
    %526 = vmatprep.subr.mxu0 0.0
    %527 = vmatpush1.msra.mxu0 %v484
    %528 = vmatprep.subr.mxu0 0.0
    %529 = vmatpush1.msra.mxu0 %v483
    %530 = vmatprep.subr.mxu0 0.0
    %531 = vmatpush1.msra.mxu0 %v482
    %532 = vmatprep.subr.mxu0 0.0
    %533 = vmatpush1.msra.mxu0 %v481
    %534 = vmatprep.subr.mxu0 0.0
    %535 = vmatpush1.msra.mxu0 %v480
    %536 = vmatprep.subr.mxu0 0.0
    %537 = vmatpush1.msra.mxu0 %v479
    %538 = vmatprep.subr.mxu0 0.0
    %539 = vmatpush1.msra.mxu0 %v478
    %540 = vmatprep.subr.mxu0 0.0
    %541 = vmatpush1.msra.mxu0 %v477
    %542 = vmatprep.subr.mxu0 0.0
    %543 = vmatpush1.msra.mxu0 %v476
    %544 = vmatprep.subr.mxu0 0.0
    %545 = vmatpush1.msra.mxu0 %v475
    %546 = vmatprep.subr.mxu0 0.0
    %547 = vmatpush2.msra.mxu0 %v506
    %548 = vmatprep.subr.mxu0 0.0
    %549 = vmatpush2.msra.mxu0 %v505
    %550 = vmatprep.subr.mxu0 0.0
    %551 = vmatpush2.msra.mxu0 %v504
    %552 = vmatprep.subr.mxu0 0.0
    %553 = vmatpush2.msra.mxu0 %v503
    %554 = vmatprep.subr.mxu0 0.0
    %555 = vmatpush2.msra.mxu0 %v502
    %556 = vmatprep.subr.mxu0 0.0
    %557 = vmatpush2.msra.mxu0 %v501
    %558 = vmatprep.subr.mxu0 0.0
    %559 = vmatpush2.msra.mxu0 %v500
    %560 = vmatprep.subr.mxu0 0.0
    %561 = vmatpush2.msra.mxu0 %v499
    %562 = vmatprep.subr.mxu0 0.0
    %563 = vmatpush2.msra.mxu0 %v498
    %564 = vmatprep.subr.mxu0 0.0
    %565 = vmatpush2.msra.mxu0 %v497
    %566 = vmatprep.subr.mxu0 0.0
    %567 = vmatpush2.msra.mxu0 %v496
    %568 = vmatprep.subr.mxu0 0.0
    %569 = vmatpush2.msra.mxu0 %v495
    %570 = vmatprep.subr.mxu0 0.0
    %571 = vmatpush2.msra.mxu0 %v494
    %572 = vmatprep.subr.mxu0 0.0
    %573 = vmatpush2.msra.mxu0 %v493
    %574 = vmatprep.subr.mxu0 0.0
    %575 = vmatpush2.msra.mxu0 %v492
    %576 = vmatprep.subr.mxu0 0.0
    %577 = vmatpush2.msra.mxu0 %v491
    %578 = vmatprep.mubr.f32.mxu0 %v474
    %579 = vmatmul.mubr.f32.gmra.mxu0 %v473
    %v580 = vpop.f32.mrf.mxu0
    %v581 = vadd.f32 %v512, %v580
    %v582 = vpop.f32.mrf.mxu0
    %583 = vdwg.mxu0
    %584 = vst [vmem:[%s7] sm:$0xff] %v581
    // Predicated region
    $region38: #{critic_v_forward_padded.1} parent=1 // pred_check
      _
    $region39: #{critic_v_forward_padded.1} parent=1 // pred_check_branch
      %586 = sbr.rel (0) target = $region41
    $region40: #{critic_v_forward_padded.1} parent=1 // pred_region
      _
    $region41: #{critic_v_forward_padded.1} parent=1 // pred_fallthru
      _
    // Predicated region
    $region42: #{critic_v_forward_padded.1} parent=1 // pred_check
      _
    $region43: #{critic_v_forward_padded.1} parent=1 // pred_check_branch
      %588 = sbr.rel (0) target = $region45
    $region44: #{critic_v_forward_padded.1} parent=1 // pred_region
      _
    $region45: #{critic_v_forward_padded.1} parent=1 // pred_fallthru
      _
    %589 = vsyncpa [#allocation3], 1
    %590 = vsyncpa [#allocation5], 1

</llo_original>
